<compile_context>
chip_gen: v6e
topology: v6e:2x2x1
jax: 0.10.0
libtpu: 0.0.40
codegen_flags: <defaults>
</compile_context>

<pallas_src>
import functools

import jax
import jax.numpy as jnp
from jax.experimental import pallas as pl
from jax.experimental.pallas import tpu as pltpu


def _round_up(n, m):
    return ((n + m - 1) // m) * m


def cnn_kernel(x_ref, w_ref, o_ref, *, tb, cout, l_out_pad, roll_pool):
    # x_ref: (TB, KD)   bf16 - flattened padded inputs; lane Cin*L_pad is 1.0 (bias lane)
    # w_ref: (KD, N)    bf16 - block-Toeplitz conv weight with bias row folded in
    # o_ref: (TB, 128)  f32 when roll_pool else (TB, Cout) f32
    y = jnp.dot(x_ref[...], w_ref[...], preferred_element_type=jnp.float32)
    y = jnp.maximum(y, 0.0)                      # ReLU; padded time columns are exactly 0
    if roll_pool:
        # Columns are t-major (col = t*Cout + o), N is a multiple of 128 and
        # Cout divides 128. Stage 1: fold the 128-aligned column blocks with
        # elementwise max (no relayout). Stage 2: fold the remaining 128/Cout
        # lane groups with cheap XLU lane rotations. Extra (zero) time columns
        # are harmless because post-ReLU values are >= 0.
        n_blk = (l_out_pad * cout) // 128
        m = y[:, 0:128]
        for g in range(1, n_blk):
            m = jnp.maximum(m, y[:, g * 128:(g + 1) * 128])
        s = 64
        while s >= cout:
            m = jnp.maximum(m, pltpu.roll(m, s, axis=1))
            s //= 2
        o_ref[...] = m                           # lanes [0, Cout) hold the pooled result
    else:
        # Generic fallback (Cout does not divide 128).
        pooled = jnp.max(y.reshape(tb, l_out_pad, cout), axis=1)
        o_ref[...] = pooled


def cnn_forward(x, weight, bias, *, kernel_size=5, padding=1, block_rows=None):
    """x: (B, Cin, L) f32, weight: (Cout, Cin, K) f32, bias: (Cout,) f32."""
    B, Cin, L = x.shape
    Cout, Cin_w, K = weight.shape
    assert Cin_w == Cin and K == kernel_size
    L_pad = L + 2 * padding
    L_out = L_pad - K + 1                        # = max_word_length - 2 for k=5, pad=1

    # Fast roll-based pooling needs Cout | 128 (128 = 2**7, so 128/Cout is a pow2).
    roll_pool = (Cout <= 128) and (128 % Cout == 0)
    group = (128 // Cout) if roll_pool else 1
    L_out_pad = _round_up(L_out, group)          # extra zero time columns (see kernel)
    N = L_out_pad * Cout
    KD = _round_up(Cin * L_pad + 1, 128)         # +1 bias lane; lane dim padded to 128

    # Row tile: >=2 grid steps when B is large (v7x 2-TC sharding), capped at 128
    # to bound the live f32 intermediate (TB, N).
    if block_rows is None:
        TB = min(128, _round_up(pl.cdiv(B, 2), 8))
    else:
        TB = _round_up(block_rows, 8)
    B_pad = _round_up(B, TB)

    # --- Input: zero-pad time in the original NCW layout (no transpose), flatten
    #     contiguously so flat index = c*L_pad + p, then pad lanes/rows with 1.0:
    #     lane Cin*L_pad becomes the bias lane; the remaining 1.0 lanes hit zero
    #     weight rows and the padded batch rows are sliced off. Cast bf16 for MXU.
    x_pad = jnp.pad(x, ((0, 0), (0, 0), (padding, padding)))          # (B, Cin, L_pad)
    x_flat = x_pad.reshape(B, Cin * L_pad)
    x_flat = jnp.pad(x_flat, ((0, B_pad - B), (0, KD - Cin * L_pad)),
                     constant_values=1.0)
    x_bf = x_flat.astype(jnp.bfloat16)                                # (B_pad, KD)

    # --- Block-Toeplitz weight: W[c*L_pad + p, t*Cout + o] = weight[o, c, p - t]
    #     (0 outside the tap range); row Cin*L_pad carries the bias.
    k_idx = jnp.arange(K)[:, None, None]
    p_idx = jnp.arange(L_pad)[None, :, None]
    t_idx = jnp.arange(L_out)[None, None, :]
    S = (p_idx == t_idx + k_idx).astype(jnp.float32)                  # (K, L_pad, L_out)
    w_kco = jnp.transpose(weight, (2, 1, 0))                          # (K, Cin, Cout)
    W4 = jnp.einsum("kpt,kco->cpto", S, w_kco)                        # (Cin,L_pad,L_out,Cout)
    W4 = jnp.pad(W4, ((0, 0), (0, 0), (0, L_out_pad - L_out), (0, 0)))
    W2 = W4.reshape(Cin * L_pad, N)
    b_row = jnp.pad(jnp.tile(bias, L_out),
                    (0, (L_out_pad - L_out) * Cout)).reshape(1, N)
    Wt = jnp.concatenate([W2, b_row], axis=0)
    Wt = jnp.pad(Wt, ((0, KD - Wt.shape[0]), (0, 0))).astype(jnp.bfloat16)  # (KD, N)

    out_cols = 128 if roll_pool else Cout
    kernel = functools.partial(cnn_kernel, tb=TB, cout=Cout,
                               l_out_pad=L_out_pad, roll_pool=roll_pool)

    out = pl.pallas_call(
        kernel,
        out_shape=jax.ShapeDtypeStruct((B_pad, out_cols), jnp.float32),
        grid=(B_pad // TB,),
        in_specs=[
            pl.BlockSpec((TB, KD), lambda i: (i, 0)),        # contiguous row tile
            pl.BlockSpec((KD, N), lambda i: (0, 0)),         # resident weight (+bias)
        ],
        out_specs=pl.BlockSpec((TB, out_cols), lambda i: (i, 0)),
        compiler_params=pltpu.CompilerParams(
            dimension_semantics=("parallel",)),
    )(x_bf, Wt)

    # torch .squeeze(): (B, Cout, 1) -> (B, Cout)  (batch > 1 assumed, as in the
    # assignment; for batch == 1 torch would return shape (Cout,)).
    return out[:B, :Cout] if roll_pool else out[:B]


def reference_forward(x, weight, bias):
    conv = jax.lax.conv_general_dilated(
        x, weight, window_strides=(1,), padding=[(1, 1)],
        dimension_numbers=("NCH", "OIH", "NCH"))
    conv = conv + bias[None, :, None]
    return jnp.max(jax.nn.relu(conv), axis=-1)


if __name__ == "__main__":
    # Module hyper-parameters (small, consistent with the PyTorch module).
    batch_size = 2
    char_embed_size = 4      # input channels
    word_embed_size = 32     # output channels / num filters
    max_word_length = 16
    kernel_size = 5

    key = jax.random.PRNGKey(0)
    kx, kw, kb = jax.random.split(key, 3)

    x = jax.random.normal(kx, (batch_size, char_embed_size, max_word_length),
                          dtype=jnp.float32)
    weight = (jax.random.normal(
        kw, (word_embed_size, char_embed_size, kernel_size), dtype=jnp.float32)
        * 0.1)
    bias = jax.random.normal(kb, (word_embed_size,), dtype=jnp.float32) * 0.1

    fwd = jax.jit(functools.partial(cnn_forward,
                                    kernel_size=kernel_size, padding=1))
    out = jax.block_until_ready(fwd(x, weight, bias))
    assert out.shape == (batch_size, word_embed_size), out.shape

    # Tight check against a reference computed from the same bf16-quantized
    # operands (isolates kernel math from the intentional bf16 MXU cast).
    deq = lambda a: a.astype(jnp.bfloat16).astype(jnp.float32)
    ref_q = reference_forward(deq(x), deq(weight), deq(bias))
    assert jnp.allclose(out, ref_q, atol=1e-3, rtol=1e-3), (
        float(jnp.max(jnp.abs(out - ref_q))))

    # Loose check against the full-f32 reference (bf16 quantization error only).
    ref = reference_forward(x, weight, bias)
    assert jnp.allclose(out, ref, atol=5e-2, rtol=5e-2), (
        float(jnp.max(jnp.abs(out - ref))))

    print("KERNEL_OK")
</pallas_src>

<mosaic_0001>
module attributes {stable_mosaic.version = 11 : i64} {
  func.func @cnn_kernel(%arg0: i32, %arg1: memref<8x128xbf16, #tpu.memory_space<vmem>>, %arg2: memref<128x512xbf16, #tpu.memory_space<vmem>>, %arg3: memref<8x128xf32, #tpu.memory_space<vmem>>) attributes {dimension_semantics = [#tpu.dimension_semantics<parallel>], iteration_bounds = array<i64: 1>, scalar_prefetch = 0 : i64, scratch_operands = 0 : i64, tpu.core_type = #tpu.core_type<tc>, window_params = [{transform_indices = @transform_0, window_bounds = array<i64: 8, 128>}, {pipeline_mode = #tpu.pipeline_mode<synchronous>, transform_indices = @transform_1, window_bounds = array<i64: 128, 512>}, {transform_indices = @transform_2, window_bounds = array<i64: 8, 128>}]} {
    %c0 = arith.constant 0 : index
    %c0_0 = arith.constant 0 : index
    %0 = vector.load %arg1[%c0, %c0_0] : memref<8x128xbf16, #tpu.memory_space<vmem>>, vector<8x128xbf16>
    %c0_1 = arith.constant 0 : index
    %c0_2 = arith.constant 0 : index
    %1 = vector.load %arg2[%c0_1, %c0_2] : memref<128x512xbf16, #tpu.memory_space<vmem>>, vector<128x512xbf16>
    %cst = arith.constant dense<0.000000e+00> : vector<8x512xf32>
    %2 = tpu.matmul %0, %1, %cst {dimension_numbers = #tpu.dot_dimension_numbers<[1], [0], [0], [1], [0, 0, 1, 1], [], []>} : vector<8x128xbf16>, vector<128x512xbf16>, vector<8x512xf32> -> vector<8x512xf32>
    %cst_3 = arith.constant 0.000000e+00 : f32
    %3 = vector.broadcast %cst_3 : f32 to vector<8x512xf32>
    %4 = arith.maximumf %2, %3 : vector<8x512xf32>
    %5 = vector.extract_strided_slice %4 {offsets = [0, 0], sizes = [8, 128], strides = [1, 1]} : vector<8x512xf32> to vector<8x128xf32>
    %6 = vector.extract_strided_slice %4 {offsets = [0, 128], sizes = [8, 128], strides = [1, 1]} : vector<8x512xf32> to vector<8x128xf32>
    %7 = arith.maximumf %5, %6 : vector<8x128xf32>
    %8 = vector.extract_strided_slice %4 {offsets = [0, 256], sizes = [8, 128], strides = [1, 1]} : vector<8x512xf32> to vector<8x128xf32>
    %9 = arith.maximumf %7, %8 : vector<8x128xf32>
    %10 = vector.extract_strided_slice %4 {offsets = [0, 384], sizes = [8, 128], strides = [1, 1]} : vector<8x512xf32> to vector<8x128xf32>
    %11 = arith.maximumf %9, %10 : vector<8x128xf32>
    %c64_i32 = arith.constant 64 : i32
    %12 = tpu.dynamic_rotate %11 by %c64_i32 dim 1 : vector<8x128xf32>, i32 -> vector<8x128xf32>
    %13 = arith.maximumf %11, %12 : vector<8x128xf32>
    %c32_i32 = arith.constant 32 : i32
    %14 = tpu.dynamic_rotate %13 by %c32_i32 dim 1 : vector<8x128xf32>, i32 -> vector<8x128xf32>
    %15 = arith.maximumf %13, %14 : vector<8x128xf32>
    %c0_4 = arith.constant 0 : index
    %c0_5 = arith.constant 0 : index
    %16 = vector.load %arg3[%c0_4, %c0_5] : memref<8x128xf32, #tpu.memory_space<vmem>>, vector<8x128xf32>
    tpu.vector_store %arg3[%c0_4, %c0_5], %15 {strides = array<i32>} : memref<8x128xf32, #tpu.memory_space<vmem>>, vector<8x128xf32>,
    return
  }
  func.func @transform_0(%arg0: i32) -> (i32, i32) {
    %c0_i32 = arith.constant 0 : i32
    %c0_i32_0 = arith.constant 0 : i32
    return %arg0, %c0_i32 : i32, i32
  }
  func.func @transform_1(%arg0: i32) -> (i32, i32) {
    %c0_i32 = arith.constant 0 : i32
    %c0_i32_0 = arith.constant 0 : i32
    %c0_i32_1 = arith.constant 0 : i32
    return %c0_i32, %c0_i32_0 : i32, i32
  }
  func.func @transform_2(%arg0: i32) -> (i32, i32) {
    %c0_i32 = arith.constant 0 : i32
    %c0_i32_0 = arith.constant 0 : i32
    return %arg0, %c0_i32 : i32, i32
  }
}

</mosaic_0001>

<llo_original>
// kernel: tile.0
$region0: #{tile.0}
  %s0 = inlined_call_operand.vmem [shape: bf16[14,32], index: 0, kind: input, shape index: {}]
  %s1 = inlined_call_operand.vmem [shape: bf16[448], index: 1, kind: output, shape index: {}]
  $region1: #{tile.0} parent=0
    #allocation0 [shape = 'u8[4096]{0}', space=vmem, size = 0x1000, scoped, tag = 'scoped mem for output reshape']
    #allocation1 [shape = 'u8[8192]{0}', space=vmem, size = 0x2000, scoped, tag = 'scoped mem for input reshape']
    %s3 = smul.u32 4, 2
    %s4 = sshll.u32 1, %s3
    %s5 = ssub.s32 %s4, 1
    %s6 = scalar_lea.vmem %s0, 4
    %s7 = sshrl.u32 %s5, 1
    %s8 = sor.u32 %s5, %s7
    %s9 = sand.u32 %s8, 85
    %s10 = sshrl.u32 %s9, 1
    %s11 = sor.u32 %s9, %s10
    %s12 = sand.u32 51, %s11
    %s13 = sshrl.u32 %s12, 2
    %s14 = sor.u32 %s12, %s13
    %s15 = sand.u32 15, %s14
    %v16 = vld [vmem:[%s6] sm:%s15]
    %v17 = vunpack.c.l.bf16 %v16
    %v18 = vunpack.c.h.bf16 %v16
    %s19 = scalar_lea.vmem [#allocation1], 8
    %20 = vst [vmem:[%s19] sm:%s5] %v17
    %s21 = sshrl.u32 %s5, 1
    %s22 = sor.u32 %s5, %s21
    %s23 = sand.u32 %s22, 85
    %s24 = sshrl.u32 %s23, 1
    %s25 = sor.u32 %s23, %s24
    %s26 = sand.u32 51, %s25
    %s27 = sshrl.u32 %s26, 2
    %s28 = sor.u32 %s26, %s27
    %s29 = sand.u32 15, %s28
    %v30 = vld [vmem:[%s0] sm:%s29]
    %v31 = vunpack.c.l.bf16 %v30
    %v32 = vunpack.c.h.bf16 %v30
    %33 = vst [vmem:[#allocation1] sm:%s5] %v31
    %v34 = vld [vmem:[#allocation1] ss:$4 sm:$0xf]
    %vm35 = vcmask 261120
    %36 = vst.msk [vmem:[#allocation0] sm:$0xf] %vm35, %v34
    %s37 = scalar_lea.vmem [#allocation1], 3
    %v38 = vld [vmem:[%s37] ss:$4 sm:$0x7]
    %39 = vrot.lane.b32.xlu0 %v38, 96
    %v40 = vpop.permute.xlu0 %39
    %vm41 = vcmask 1048320
    %42 = vst.msk [vmem:[#allocation0] sm:$0x7] %vm41, %v40
    %s43 = scalar_lea.vmem [#allocation1], 2
    %v44 = vld [vmem:[%s43] ss:$4 sm:$0x7]
    %45 = vrot.lane.b32.xlu0 %v44, 64
    %v46 = vpop.permute.xlu0 %45
    %vm47 = vcmask 785920
    %48 = vst.msk [vmem:[#allocation0] sm:$0x7] %vm47, %v46
    %s49 = scalar_lea.vmem [#allocation1], 1
    %v50 = vld [vmem:[%s49] ss:$4 sm:$0xf]
    %51 = vrot.lane.b32.xlu0 %v50, 32
    %v52 = vpop.permute.xlu0 %51
    %vm53 = vcmask 523520
    %54 = vst.msk [vmem:[#allocation0] sm:$0xf] %vm53, %v52
    %s56 = smul.u32 2, 2
    %s57 = sshll.u32 1, %s56
    %s58 = ssub.s32 %s57, 1
    %s59 = sshrl.u32 %s56, 1
    %v60 = vld [vmem:[#allocation0] sm:%s58]
    %v61 = vpack.c.bf16 0.0, %v60
    %s62 = sshll.u32 1, %s59
    %s63 = ssub.s32 %s62, 1
    %64 = vst [vmem:[%s1] sm:%s63] %v61

// kernel: cnn_forward.1
$region0: #{cnn_forward.1}
  #allocation0 [shape = 'u32[]', space=smem, size = 0x4, offset = 0x4, fixed_abs, tag = 'smem constant byte address 0x4 - core index']
  #allocation1 [shape = 'u32[144,128]{1,0:T(1,128)}', space=vmem, size = 0x12000, scoped, tag = 'internal scratch']
  %s0 = inlined_call_operand.vmem [shape: bf16[8,128], index: 0, kind: input, shape index: {}]
  %s1 = inlined_call_operand.vmem [shape: bf16[128,512], index: 1, kind: input, shape index: {}]
  %s2 = inlined_call_operand.vmem [shape: f32[8,128], index: 2, kind: output, shape index: {}]
  %s3 = sld [smem:[#allocation0]]
  $region18: #{cnn_forward.1} parent=0
    _
  %s5 = ssub.s32 1, %s3
  %s6 = scalar_select 0, %s5, %s3
  // Predicated region
  $region2: #{cnn_forward.1} parent=0 // pred_check
    _
  $region3: #{cnn_forward.1} parent=0 // pred_check_branch
    %8 = sbr.rel (0) target = $region5
  $region4: #{cnn_forward.1} parent=0 // pred_region
    _
  $region5: #{cnn_forward.1} parent=0 // pred_fallthru
    _
  // Predicated region
  $region6: #{cnn_forward.1} parent=0 // pred_check
    _
  $region7: #{cnn_forward.1} parent=0 // pred_check_branch
    %10 = sbr.rel (0) target = $region9
  $region8: #{cnn_forward.1} parent=0 // pred_region
    _
  $region9: #{cnn_forward.1} parent=0 // pred_fallthru
    _
  %v12 = vld [vmem:[%s0] sm:$0xf]
  %v13 = vld [vmem:[%s1] sm:$0xff]
  %v14 = vld [vmem:[%s1 + $0x8] sm:$0xff]
  %v15 = vld [vmem:[%s1 + $0x10] sm:$0xff]
  %v16 = vld [vmem:[%s1 + $0x18] sm:$0xff]
  %v17 = vld [vmem:[%s1 + $0x20] sm:$0xff]
  %v18 = vld [vmem:[%s1 + $0x28] sm:$0xff]
  %v19 = vld [vmem:[%s1 + $0x30] sm:$0xff]
  %v20 = vld [vmem:[%s1 + $0x38] sm:$0xff]
  %v21 = vld [vmem:[%s1 + $0x40] sm:$0xff]
  %v22 = vld [vmem:[%s1 + $0x48] sm:$0xff]
  %v23 = vld [vmem:[%s1 + $0x50] sm:$0xff]
  %v24 = vld [vmem:[%s1 + $0x58] sm:$0xff]
  %v25 = vld [vmem:[%s1 + $0x60] sm:$0xff]
  %v26 = vld [vmem:[%s1 + $0x68] sm:$0xff]
  %v27 = vld [vmem:[%s1 + $0x70] sm:$0xff]
  %v28 = vld [vmem:[%s1 + $0x78] sm:$0xff]
  %v29 = vld [vmem:[%s1 + $0x80] sm:$0xff]
  %v30 = vld [vmem:[%s1 + $0x88] sm:$0xff]
  %v31 = vld [vmem:[%s1 + $0x90] sm:$0xff]
  %v32 = vld [vmem:[%s1 + $0x98] sm:$0xff]
  %v33 = vld [vmem:[%s1 + $0xa0] sm:$0xff]
  %v34 = vld [vmem:[%s1 + $0xa8] sm:$0xff]
  %v35 = vld [vmem:[%s1 + $0xb0] sm:$0xff]
  %v36 = vld [vmem:[%s1 + $0xb8] sm:$0xff]
  %v37 = vld [vmem:[%s1 + $0xc0] sm:$0xff]
  %v38 = vld [vmem:[%s1 + $0xc8] sm:$0xff]
  %v39 = vld [vmem:[%s1 + $0xd0] sm:$0xff]
  %v40 = vld [vmem:[%s1 + $0xd8] sm:$0xff]
  %v41 = vld [vmem:[%s1 + $0xe0] sm:$0xff]
  %v42 = vld [vmem:[%s1 + $0xe8] sm:$0xff]
  %v43 = vld [vmem:[%s1 + $0xf0] sm:$0xff]
  %v44 = vld [vmem:[%s1 + $0xf8] sm:$0xff]
  %v77 = vunpack.c.l.b16 %v13
  %v78 = vunpack.c.h.b16 %v13
  %v79 = vunpack.c.l.b16 %v14
  %v80 = vunpack.c.h.b16 %v14
  %v81 = vunpack.c.l.b16 %v15
  %v82 = vunpack.c.h.b16 %v15
  %v83 = vunpack.c.l.b16 %v16
  %v84 = vunpack.c.h.b16 %v16
  %v85 = vunpack.c.l.b16 %v17
  %v86 = vunpack.c.h.b16 %v17
  %v87 = vunpack.c.l.b16 %v18
  %v88 = vunpack.c.h.b16 %v18
  %v89 = vunpack.c.l.b16 %v19
  %v90 = vunpack.c.h.b16 %v19
  %v91 = vunpack.c.l.b16 %v20
  %v92 = vunpack.c.h.b16 %v20
  %v93 = vunpack.c.l.b16 %v21
  %v94 = vunpack.c.h.b16 %v21
  %v95 = vunpack.c.l.b16 %v22
  %v96 = vunpack.c.h.b16 %v22
  %v97 = vunpack.c.l.b16 %v23
  %v98 = vunpack.c.h.b16 %v23
  %v99 = vunpack.c.l.b16 %v24
  %v100 = vunpack.c.h.b16 %v24
  %v101 = vunpack.c.l.b16 %v25
  %v102 = vunpack.c.h.b16 %v25
  %v103 = vunpack.c.l.b16 %v26
  %v104 = vunpack.c.h.b16 %v26
  %v105 = vunpack.c.l.b16 %v27
  %v106 = vunpack.c.h.b16 %v27
  %v107 = vunpack.c.l.b16 %v28
  %v108 = vunpack.c.h.b16 %v28
  %v109 = vunpack.c.l.b16 %v29
  %v110 = vunpack.c.h.b16 %v29
  %v111 = vunpack.c.l.b16 %v30
  %v112 = vunpack.c.h.b16 %v30
  %v113 = vunpack.c.l.b16 %v31
  %v114 = vunpack.c.h.b16 %v31
  %v115 = vunpack.c.l.b16 %v32
  %v116 = vunpack.c.h.b16 %v32
  %v117 = vunpack.c.l.b16 %v33
  %v118 = vunpack.c.h.b16 %v33
  %v119 = vunpack.c.l.b16 %v34
  %v120 = vunpack.c.h.b16 %v34
  %v121 = vunpack.c.l.b16 %v35
  %v122 = vunpack.c.h.b16 %v35
  %v123 = vunpack.c.l.b16 %v36
  %v124 = vunpack.c.h.b16 %v36
  %v125 = vunpack.c.l.b16 %v37
  %v126 = vunpack.c.h.b16 %v37
  %v127 = vunpack.c.l.b16 %v38
  %v128 = vunpack.c.h.b16 %v38
  %v129 = vunpack.c.l.b16 %v39
  %v130 = vunpack.c.h.b16 %v39
  %v131 = vunpack.c.l.b16 %v40
  %v132 = vunpack.c.h.b16 %v40
  %v133 = vunpack.c.l.b16 %v41
  %v134 = vunpack.c.h.b16 %v41
  %v135 = vunpack.c.l.b16 %v42
  %v136 = vunpack.c.h.b16 %v42
  %v137 = vunpack.c.l.b16 %v43
  %v138 = vunpack.c.h.b16 %v43
  %v139 = vunpack.c.l.b16 %v44
  %v140 = vunpack.c.h.b16 %v44
  %v141 = vpack.c.b16 %v81, %v77
  %v142 = vpack.c.b16 %v82, %v78
  %v143 = vpack.c.b16 %v83, %v79
  %v144 = vpack.c.b16 %v84, %v80
  %v145 = vpack.c.b16 %v89, %v85
  %v146 = vpack.c.b16 %v90, %v86
  %v147 = vpack.c.b16 %v91, %v87
  %v148 = vpack.c.b16 %v92, %v88
  %v149 = vpack.c.b16 %v97, %v93
  %v150 = vpack.c.b16 %v98, %v94
  %v151 = vpack.c.b16 %v99, %v95
  %v152 = vpack.c.b16 %v100, %v96
  %v153 = vpack.c.b16 %v105, %v101
  %v154 = vpack.c.b16 %v106, %v102
  %v155 = vpack.c.b16 %v107, %v103
  %v156 = vpack.c.b16 %v108, %v104
  %v157 = vpack.c.b16 %v113, %v109
  %v158 = vpack.c.b16 %v114, %v110
  %v159 = vpack.c.b16 %v115, %v111
  %v160 = vpack.c.b16 %v116, %v112
  %v161 = vpack.c.b16 %v121, %v117
  %v162 = vpack.c.b16 %v122, %v118
  %v163 = vpack.c.b16 %v123, %v119
  %v164 = vpack.c.b16 %v124, %v120
  %v165 = vpack.c.b16 %v129, %v125
  %v166 = vpack.c.b16 %v130, %v126
  %v167 = vpack.c.b16 %v131, %v127
  %v168 = vpack.c.b16 %v132, %v128
  %v169 = vpack.c.b16 %v137, %v133
  %v170 = vpack.c.b16 %v138, %v134
  %v171 = vpack.c.b16 %v139, %v135
  %v172 = vpack.c.b16 %v140, %v136
  %205 = vmatprep.subr.bf16.mxu0 %v170
  %206 = vmatpush1.bf16.msra.mxu0 %v169
  %207 = vmatprep.subr.bf16.mxu0 %v166
  %208 = vmatpush1.bf16.msra.mxu0 %v165
  %209 = vmatprep.subr.bf16.mxu0 %v162
  %210 = vmatpush1.bf16.msra.mxu0 %v161
  %211 = vmatprep.subr.bf16.mxu0 %v158
  %212 = vmatpush1.bf16.msra.mxu0 %v157
  %213 = vmatprep.subr.bf16.mxu0 %v154
  %214 = vmatpush1.bf16.msra.mxu0 %v153
  %215 = vmatprep.subr.bf16.mxu0 %v150
  %216 = vmatpush1.bf16.msra.mxu0 %v149
  %217 = vmatprep.subr.bf16.mxu0 %v146
  %218 = vmatpush1.bf16.msra.mxu0 %v145
  %219 = vmatprep.subr.bf16.mxu0 %v142
  %220 = vmatpush1.bf16.msra.mxu0 %v141
  %221 = vmatprep.subr.bf16.mxu0 0
  %222 = vmatpush2.bf16.msra.mxu0 0
  %223 = vmatprep.subr.bf16.mxu0 0
  %224 = vmatpush2.bf16.msra.mxu0 0
  %225 = vmatprep.subr.bf16.mxu0 0
  %226 = vmatpush2.bf16.msra.mxu0 0
  %227 = vmatprep.subr.bf16.mxu0 0
  %228 = vmatpush2.bf16.msra.mxu0 0
  %229 = vmatprep.subr.bf16.mxu0 0
  %230 = vmatpush2.bf16.msra.mxu0 0
  %231 = vmatprep.subr.bf16.mxu0 0
  %232 = vmatpush2.bf16.msra.mxu0 0
  %233 = vmatprep.subr.bf16.mxu0 0
  %234 = vmatpush2.bf16.msra.mxu0 0
  %235 = vmatprep.subr.bf16.mxu0 0
  %236 = vmatpush2.bf16.msra.mxu0 0
  %237 = vmatprep.mubr.bf16.mxu0 0
  %238 = vmatmul.mubr.bf16.gmra.mxu0 %v12
  %v239 = vpop.f32.mrf.mxu0
  %v240 = vadd.f32 0.0, %v239
  %v241 = vpop.f32.mrf.mxu0
  %v242 = vadd.f32 0.0, %v241
  %v243 = vpop.f32.mrf.mxu0
  %v244 = vpop.f32.mrf.mxu0
  %245 = vdwg.mxu0
  %246 = vmatprep.subr.bf16.mxu0 %v172
  %247 = vmatpush1.bf16.msra.mxu0 %v171
  %248 = vmatprep.subr.bf16.mxu0 %v168
  %249 = vmatpush1.bf16.msra.mxu0 %v167
  %250 = vmatprep.subr.bf16.mxu0 %v164
  %251 = vmatpush1.bf16.msra.mxu0 %v163
  %252 = vmatprep.subr.bf16.mxu0 %v160
  %253 = vmatpush1.bf16.msra.mxu0 %v159
  %254 = vmatprep.subr.bf16.mxu0 %v156
  %255 = vmatpush1.bf16.msra.mxu0 %v155
  %256 = vmatprep.subr.bf16.mxu0 %v152
  %257 = vmatpush1.bf16.msra.mxu0 %v151
  %258 = vmatprep.subr.bf16.mxu0 %v148
  %259 = vmatpush1.bf16.msra.mxu0 %v147
  %260 = vmatprep.subr.bf16.mxu0 %v144
  %261 = vmatpush1.bf16.msra.mxu0 %v143
  %262 = vmatprep.subr.bf16.mxu0 0
  %263 = vmatpush2.bf16.msra.mxu0 0
  %264 = vmatprep.subr.bf16.mxu0 0
  %265 = vmatpush2.bf16.msra.mxu0 0
  %266 = vmatprep.subr.bf16.mxu0 0
  %267 = vmatpush2.bf16.msra.mxu0 0
  %268 = vmatprep.subr.bf16.mxu0 0
  %269 = vmatpush2.bf16.msra.mxu0 0
  %270 = vmatprep.subr.bf16.mxu0 0
  %271 = vmatpush2.bf16.msra.mxu0 0
  %272 = vmatprep.subr.bf16.mxu0 0
  %273 = vmatpush2.bf16.msra.mxu0 0
  %274 = vmatprep.subr.bf16.mxu0 0
  %275 = vmatpush2.bf16.msra.mxu0 0
  %276 = vmatprep.subr.bf16.mxu0 0
  %277 = vmatpush2.bf16.msra.mxu0 0
  %278 = vmatprep.mubr.bf16.mxu0 0
  %279 = vmatmul.mubr.bf16.gmra.mxu0 %v12
  %v280 = vpop.f32.mrf.mxu0
  %v281 = vadd.f32 0.0, %v280
  %v282 = vpop.f32.mrf.mxu0
  %v283 = vadd.f32 0.0, %v282
  %v284 = vpop.f32.mrf.mxu0
  %v285 = vpop.f32.mrf.mxu0
  %286 = vdwg.mxu0
  %v287 = vmax.f32 %v240, 0.0
  %v288 = vmax.f32 %v242, 0.0
  %v289 = vmax.f32 %v281, 0.0
  %v290 = vmax.f32 %v283, 0.0
  %v291 = vmax.f32 %v287, %v288
  %v292 = vmax.f32 %v291, %v289
  %v293 = vmax.f32 %v292, %v290
  %294 = vrot.lane.b32.xlu0 %v293, 64
  %v295 = vpop.permute.xlu0 %294
  %v296 = vmax.f32 %v293, %v295
  %297 = vrot.lane.b32.xlu0 %v296, 32
  %v298 = vpop.permute.xlu0 %297
  %v299 = vmax.f32 %v296, %v298
  %300 = vst [vmem:[%s2] sm:$0xff] %v299
  // Predicated region
  $region10: #{cnn_forward.1} parent=0 // pred_check
    _
  $region11: #{cnn_forward.1} parent=0 // pred_check_branch
    %302 = sbr.rel (0) target = $region13
  $region12: #{cnn_forward.1} parent=0 // pred_region
    _
  $region13: #{cnn_forward.1} parent=0 // pred_fallthru
    _
  // Predicated region
  $region14: #{cnn_forward.1} parent=0 // pred_check
    _
  $region15: #{cnn_forward.1} parent=0 // pred_check_branch
    %304 = sbr.rel (0) target = $region17
  $region16: #{cnn_forward.1} parent=0 // pred_region
    _
  $region17: #{cnn_forward.1} parent=0 // pred_fallthru
    _

</llo_original>
